<compile_context>
chip_gen: v7x
topology: tpu7x:2x2x1
jax: 0.10.0
libtpu: 0.0.40
codegen_flags: <defaults>
</compile_context>

<pallas_src>
import jax
import jax.numpy as jnp
from jax.experimental import pallas as pl
from jax.experimental.pallas import tpu as pltpu


def mlp_kernel(p_ref, x_ref, o_ref):
    # p_ref: (14,) f32 in SMEM  -> [w1(3x2) row-major, b1(2), w2(2x2) row-major, b2(2)]
    # x_ref: (3, TB) f32 in VMEM, batch on the 128-lane axis
    # o_ref: (2, TB) in VMEM
    x0 = x_ref[0:1, :].astype(jnp.float32)   # (1, TB)
    x1 = x_ref[1:2, :].astype(jnp.float32)
    x2 = x_ref[2:3, :].astype(jnp.float32)

    # fc1 + ReLU: h_j = relu(sum_k x_k * w1[k, j] + b1[j])   (VPU only, no MXU)
    h0 = jnp.maximum(x0 * p_ref[0] + x1 * p_ref[2] + x2 * p_ref[4] + p_ref[6], 0.0)
    h1 = jnp.maximum(x0 * p_ref[1] + x1 * p_ref[3] + x2 * p_ref[5] + p_ref[7], 0.0)

    # fc2: o_j = sum_k h_k * w2[k, j] + b2[j]
    o0 = h0 * p_ref[8] + h1 * p_ref[10] + p_ref[12]
    o1 = h0 * p_ref[9] + h1 * p_ref[11] + p_ref[13]

    o_ref[0:1, :] = o0.astype(o_ref.dtype)
    o_ref[1:2, :] = o1.astype(o_ref.dtype)


def _round_up(n, m):
    return ((n + m - 1) // m) * m


def net_3_2_forward(x, w1, b1, w2, b2, *, block_b=1024):
    """x: (B, 3); w1: (3, 2); b1: (2,); w2: (2, 2); b2: (2,) -> (B, 2)."""
    B = x.shape[0]
    # Batch tile: multiple of 128 (lane width), capped at block_b (512-2048 is the sweet spot).
    tb = min(block_b, _round_up(B, 128))
    b_pad = _round_up(B, tb)

    # Lane-dense layout: batch maps to the lane axis; pad up to a whole number of tiles.
    x_t = jnp.pad(x.T, ((0, 0), (0, b_pad - B)))                       # (3, b_pad)

    # Pack the 14 parameter scalars into one SMEM array (scalar path, no VMEM tiles).
    params = jnp.concatenate(
        [w1.reshape(-1), b1.reshape(-1), w2.reshape(-1), b2.reshape(-1)]
    ).astype(jnp.float32)                                              # (14,)

    grid = (b_pad // tb,)
    out_t = pl.pallas_call(
        mlp_kernel,
        out_shape=jax.ShapeDtypeStruct((2, b_pad), x.dtype),
        grid=grid,
        in_specs=[
            pl.BlockSpec(memory_space=pltpu.MemorySpace.SMEM),         # params (whole, SMEM)
            pl.BlockSpec((3, tb), lambda i: (0, i)),                   # x_T stream
        ],
        out_specs=pl.BlockSpec((2, tb), lambda i: (0, i)),             # lane-dense stores
        compiler_params=pltpu.CompilerParams(
            dimension_semantics=("parallel",),                         # shard batch tiles (v7x 2 TCs)
        ),
    )(params, x_t)

    return out_t[:, :B].T                                              # (B, 2)


def init_params(key):
    """Deterministic PyTorch-style init: U(-1/sqrt(fan_in), 1/sqrt(fan_in))."""
    k1, k2, k3, k4 = jax.random.split(key, 4)
    bound1 = 1.0 / jnp.sqrt(3.0)   # fc1 fan_in = 3
    bound2 = 1.0 / jnp.sqrt(2.0)   # fc2 fan_in = 2
    # Stored as (in, out) = transpose of PyTorch's (out, in) weight layout.
    w1 = jax.random.uniform(k1, (3, 2), jnp.float32, -bound1, bound1)
    b1 = jax.random.uniform(k2, (2,), jnp.float32, -bound1, bound1)
    w2 = jax.random.uniform(k3, (2, 2), jnp.float32, -bound2, bound2)
    b2 = jax.random.uniform(k4, (2,), jnp.float32, -bound2, bound2)
    return w1, b1, w2, b2


if __name__ == "__main__":
    key = jax.random.PRNGKey(0)
    kx, kx2, kp = jax.random.split(key, 3)
    w1, b1, w2, b2 = init_params(kp)

    # Small batch (single tile, padded to 128 lanes).
    batch = 8
    x = jax.random.normal(kx, (batch, 3), dtype=jnp.float32)
    out = jax.block_until_ready(net_3_2_forward(x, w1, b1, w2, b2))
    ref = jnp.maximum(x @ w1 + b1, 0.0) @ w2 + b2
    assert out.shape == (batch, 2)
    assert jnp.allclose(out, ref, atol=1e-5, rtol=1e-5)

    # Non-multiple batch with a small block size to exercise the multi-tile grid + padding path.
    batch2 = 300
    x2 = jax.random.normal(kx2, (batch2, 3), dtype=jnp.float32)
    out2 = jax.block_until_ready(net_3_2_forward(x2, w1, b1, w2, b2, block_b=256))
    ref2 = jnp.maximum(x2 @ w1 + b1, 0.0) @ w2 + b2
    assert out2.shape == (batch2, 2)
    assert jnp.allclose(out2, ref2, atol=1e-5, rtol=1e-5)

    print("KERNEL_OK")
</pallas_src>

<mosaic_0001>
module attributes {stable_mosaic.version = 11 : i64} {
  func.func @mlp_kernel(%arg0: i32, %arg1: memref<14xf32, #tpu.memory_space<smem>>, %arg2: memref<3x128xf32, #tpu.memory_space<vmem>>, %arg3: memref<2x128xf32, #tpu.memory_space<vmem>>) attributes {dimension_semantics = [#tpu.dimension_semantics<parallel>], iteration_bounds = array<i64: 1>, scalar_prefetch = 0 : i64, scratch_operands = 0 : i64, tpu.core_type = #tpu.core_type<tc>, window_params = [{transform_indices = @transform_0, window_bounds = array<i64: 14>}, {transform_indices = @transform_1, window_bounds = array<i64: 3, 128>}, {transform_indices = @transform_2, window_bounds = array<i64: 2, 128>}]} {
    %c0 = arith.constant 0 : index
    %c0_0 = arith.constant 0 : index
    %0 = vector.load %arg2[%c0, %c0_0] : memref<3x128xf32, #tpu.memory_space<vmem>>, vector<1x128xf32>
    %c1 = arith.constant 1 : index
    %c0_1 = arith.constant 0 : index
    %1 = vector.load %arg2[%c1, %c0_1] : memref<3x128xf32, #tpu.memory_space<vmem>>, vector<1x128xf32>
    %c2 = arith.constant 2 : index
    %c0_2 = arith.constant 0 : index
    %2 = vector.load %arg2[%c2, %c0_2] : memref<3x128xf32, #tpu.memory_space<vmem>>, vector<1x128xf32>
    %c0_3 = arith.constant 0 : index
    %3 = memref.load %arg1[%c0_3] : memref<14xf32, #tpu.memory_space<smem>>
    %4 = vector.broadcast %3 : f32 to vector<1x128xf32>
    %5 = arith.mulf %0, %4 : vector<1x128xf32>
    %c2_4 = arith.constant 2 : index
    %6 = memref.load %arg1[%c2_4] : memref<14xf32, #tpu.memory_space<smem>>
    %7 = vector.broadcast %6 : f32 to vector<1x128xf32>
    %8 = arith.mulf %1, %7 : vector<1x128xf32>
    %9 = arith.addf %5, %8 : vector<1x128xf32>
    %c4 = arith.constant 4 : index
    %10 = memref.load %arg1[%c4] : memref<14xf32, #tpu.memory_space<smem>>
    %11 = vector.broadcast %10 : f32 to vector<1x128xf32>
    %12 = arith.mulf %2, %11 : vector<1x128xf32>
    %13 = arith.addf %9, %12 : vector<1x128xf32>
    %c6 = arith.constant 6 : index
    %14 = memref.load %arg1[%c6] : memref<14xf32, #tpu.memory_space<smem>>
    %15 = vector.broadcast %14 : f32 to vector<1x128xf32>
    %16 = arith.addf %13, %15 : vector<1x128xf32>
    %cst = arith.constant 0.000000e+00 : f32
    %17 = vector.broadcast %cst : f32 to vector<1x128xf32>
    %18 = arith.maximumf %16, %17 : vector<1x128xf32>
    %c1_5 = arith.constant 1 : index
    %19 = memref.load %arg1[%c1_5] : memref<14xf32, #tpu.memory_space<smem>>
    %20 = vector.broadcast %19 : f32 to vector<1x128xf32>
    %21 = arith.mulf %0, %20 : vector<1x128xf32>
    %c3 = arith.constant 3 : index
    %22 = memref.load %arg1[%c3] : memref<14xf32, #tpu.memory_space<smem>>
    %23 = vector.broadcast %22 : f32 to vector<1x128xf32>
    %24 = arith.mulf %1, %23 : vector<1x128xf32>
    %25 = arith.addf %21, %24 : vector<1x128xf32>
    %c5 = arith.constant 5 : index
    %26 = memref.load %arg1[%c5] : memref<14xf32, #tpu.memory_space<smem>>
    %27 = vector.broadcast %26 : f32 to vector<1x128xf32>
    %28 = arith.mulf %2, %27 : vector<1x128xf32>
    %29 = arith.addf %25, %28 : vector<1x128xf32>
    %c7 = arith.constant 7 : index
    %30 = memref.load %arg1[%c7] : memref<14xf32, #tpu.memory_space<smem>>
    %31 = vector.broadcast %30 : f32 to vector<1x128xf32>
    %32 = arith.addf %29, %31 : vector<1x128xf32>
    %cst_6 = arith.constant 0.000000e+00 : f32
    %33 = vector.broadcast %cst_6 : f32 to vector<1x128xf32>
    %34 = arith.maximumf %32, %33 : vector<1x128xf32>
    %c8 = arith.constant 8 : index
    %35 = memref.load %arg1[%c8] : memref<14xf32, #tpu.memory_space<smem>>
    %36 = vector.broadcast %35 : f32 to vector<1x128xf32>
    %37 = arith.mulf %18, %36 : vector<1x128xf32>
    %c10 = arith.constant 10 : index
    %38 = memref.load %arg1[%c10] : memref<14xf32, #tpu.memory_space<smem>>
    %39 = vector.broadcast %38 : f32 to vector<1x128xf32>
    %40 = arith.mulf %34, %39 : vector<1x128xf32>
    %41 = arith.addf %37, %40 : vector<1x128xf32>
    %c12 = arith.constant 12 : index
    %42 = memref.load %arg1[%c12] : memref<14xf32, #tpu.memory_space<smem>>
    %43 = vector.broadcast %42 : f32 to vector<1x128xf32>
    %44 = arith.addf %41, %43 : vector<1x128xf32>
    %c9 = arith.constant 9 : index
    %45 = memref.load %arg1[%c9] : memref<14xf32, #tpu.memory_space<smem>>
    %46 = vector.broadcast %45 : f32 to vector<1x128xf32>
    %47 = arith.mulf %18, %46 : vector<1x128xf32>
    %c11 = arith.constant 11 : index
    %48 = memref.load %arg1[%c11] : memref<14xf32, #tpu.memory_space<smem>>
    %49 = vector.broadcast %48 : f32 to vector<1x128xf32>
    %50 = arith.mulf %34, %49 : vector<1x128xf32>
    %51 = arith.addf %47, %50 : vector<1x128xf32>
    %c13 = arith.constant 13 : index
    %52 = memref.load %arg1[%c13] : memref<14xf32, #tpu.memory_space<smem>>
    %53 = vector.broadcast %52 : f32 to vector<1x128xf32>
    %54 = arith.addf %51, %53 : vector<1x128xf32>
    %c0_7 = arith.constant 0 : index
    %c0_8 = arith.constant 0 : index
    %55 = vector.load %arg3[%c0_7, %c0_8] : memref<2x128xf32, #tpu.memory_space<vmem>>, vector<1x128xf32>
    tpu.vector_store %arg3[%c0_7, %c0_8], %44 {strides = array<i32>} : memref<2x128xf32, #tpu.memory_space<vmem>>, vector<1x128xf32>,
    %c1_9 = arith.constant 1 : index
    %c0_10 = arith.constant 0 : index
    %56 = vector.load %arg3[%c1_9, %c0_10] : memref<2x128xf32, #tpu.memory_space<vmem>>, vector<1x128xf32>
    tpu.vector_store %arg3[%c1_9, %c0_10], %54 {strides = array<i32>} : memref<2x128xf32, #tpu.memory_space<vmem>>, vector<1x128xf32>,
    return
  }
  func.func @transform_0(%arg0: i32) -> i32 {
    %c0_i32 = arith.constant 0 : i32
    %c0_i32_0 = arith.constant 0 : i32
    return %c0_i32 : i32
  }
  func.func @transform_1(%arg0: i32) -> (i32, i32) {
    %c0_i32 = arith.constant 0 : i32
    %c0_i32_0 = arith.constant 0 : i32
    return %c0_i32, %arg0 : i32, i32
  }
  func.func @transform_2(%arg0: i32) -> (i32, i32) {
    %c0_i32 = arith.constant 0 : i32
    %c0_i32_0 = arith.constant 0 : i32
    return %c0_i32, %arg0 : i32, i32
  }
}

</mosaic_0001>

<llo_original>
// kernel: tpu_custom_call.1
$region0: #{tpu_custom_call.1}
  #allocation0 [shape = 'u32[]', space=smem, size = 0x4, offset = 0x4, fixed_abs, tag = 'smem constant byte address 0x4 - core index']
  #allocation1 [shape = 'u32[144,128]{1,0:T(1,128)}', space=vmem, size = 0x12000, scoped, tag = 'internal scratch']
  %s0 = inlined_call_operand.hbm [shape: f32[14], index: 0, kind: input, shape index: {}]
  %s1 = inlined_call_operand.hbm [shape: f32[3,128], index: 1, kind: input, shape index: {}]
  %s2 = inlined_call_operand.hbm [shape: f32[2,128], index: 2, kind: output, shape index: {}]
  %s3 = sld [smem:[#allocation0]]
  $region26: #{tpu_custom_call.1} parent=0
    _
  %s5 = ssub.s32 1, %s3
  %s6 = scalar_select 0, %s5, %s3
  $region1: #{tpu_custom_call.1} parent=0
    #allocation2 [shape = 'u8[512]{0}', space=smem, size = 0x200, scoped, tag = 'input window, operand 0, single buffered']
    #allocation3 [shape = 's32[1]{0}', space=sflag, size = 0x4, scoped, tag = 'scoped memory for tpu_custom_call.1']
    #allocation4 [shape = 's32[1]{0}', space=sflag, size = 0x4, scoped, tag = 'scoped memory for tpu_custom_call.1']
    #allocation5 [shape = 's32[1]{0}', space=sflag, size = 0x4, scoped, tag = 'scoped memory for tpu_custom_call.1']
    #allocation6 [shape = 'u8[2048]{0}', space=vmem, size = 0x800, scoped, tag = 'input window, operand 1, single buffered']
    #allocation7 [shape = 'u8[1024]{0}', space=vmem, size = 0x400, scoped, tag = 'output window, operand 0, single buffered']
    %7 = vsyncpa [#allocation5], 0
    %8 = vsyncpa [#allocation3], 0
    %9 = vsyncpa [#allocation4], 0
    // Predicated region
    $region2: #{tpu_custom_call.1} parent=1 // pred_check
      _
    $region3: #{tpu_custom_call.1} parent=1 // pred_check_branch
      %11 = sbr.rel (0) target = $region5
    $region4: #{tpu_custom_call.1} parent=1 // pred_region
      %s13 = ssub.s32 16, 16
      %14 = vsyncadd [#allocation5], %s13
      %17 = dma.hbm_to_smem %s0, 16, [#allocation2], [#allocation5]
    $region5: #{tpu_custom_call.1} parent=1 // pred_fallthru
      _
    // Predicated region
    $region6: #{tpu_custom_call.1} parent=1 // pred_check
      _
    $region7: #{tpu_custom_call.1} parent=1 // pred_check_branch
      %19 = sbr.rel (0) target = $region9
    $region8: #{tpu_custom_call.1} parent=1 // pred_region
      %s21 = ssub.s32 64, 64
      %22 = vsyncadd [#allocation3], %s21
      %s24 = sshll.u32 [#allocation6], 4
      %s25 = int_to_ptr.vmem [resolvable:$true] %s24
      %27 = dma.hbm_to_vmem [thread:$0]  %s1, 64, %s25, [#allocation3]
    $region9: #{tpu_custom_call.1} parent=1 // pred_fallthru
      _
    // Predicated region
    $region10: #{tpu_custom_call.1} parent=1 // pred_check
      _
    $region11: #{tpu_custom_call.1} parent=1 // pred_check_branch
      %29 = sbr.rel (0) target = $region13
    $region12: #{tpu_custom_call.1} parent=1 // pred_region
      %30 = dma.done [#allocation5], 16
    $region13: #{tpu_custom_call.1} parent=1 // pred_fallthru
      _
    // Predicated region
    $region14: #{tpu_custom_call.1} parent=1 // pred_check
      _
    $region15: #{tpu_custom_call.1} parent=1 // pred_check_branch
      %32 = sbr.rel (0) target = $region17
    $region16: #{tpu_custom_call.1} parent=1 // pred_region
      %33 = dma.done [#allocation3], 64
    $region17: #{tpu_custom_call.1} parent=1 // pred_fallthru
      _
    %34 = sfence
    %v35 = vld [vmem:[#allocation6] sm:$0x1]
    %v36 = vld [vmem:[#allocation6 + $0x1] sm:$0x1]
    %v37 = vld [vmem:[#allocation6 + $0x2] sm:$0x1]
    %s38 = sld [smem:[#allocation2]]
    %v39 = vstv %s38
    %v40 = vmul.f32 %v35, %v39
    %s41 = sld [smem:[#allocation2 + $0x2]]
    %v42 = vstv %s41
    %v43 = vmul.f32 %v36, %v42
    %v44 = vadd.f32 %v40, %v43
    %s45 = sld [smem:[#allocation2 + $0x4]]
    %v46 = vstv %s45
    %v47 = vmul.f32 %v37, %v46
    %v48 = vadd.f32 %v44, %v47
    %s49 = sld [smem:[#allocation2 + $0x6]]
    %v50 = vstv %s49
    %v51 = vadd.f32 %v48, %v50
    %v52 = vmax.f32 %v51, 0.0
    %s53 = sld [smem:[#allocation2 + $0x1]]
    %v54 = vstv %s53
    %v55 = vmul.f32 %v35, %v54
    %s56 = sld [smem:[#allocation2 + $0x3]]
    %v57 = vstv %s56
    %v58 = vmul.f32 %v36, %v57
    %v59 = vadd.f32 %v55, %v58
    %s60 = sld [smem:[#allocation2 + $0x5]]
    %v61 = vstv %s60
    %v62 = vmul.f32 %v37, %v61
    %v63 = vadd.f32 %v59, %v62
    %s64 = sld [smem:[#allocation2 + $0x7]]
    %v65 = vstv %s64
    %v66 = vadd.f32 %v63, %v65
    %v67 = vmax.f32 %v66, 0.0
    %s68 = sld [smem:[#allocation2 + $0x8]]
    %v69 = vstv %s68
    %v70 = vmul.f32 %v52, %v69
    %s71 = sld [smem:[#allocation2 + $0xa]]
    %v72 = vstv %s71
    %v73 = vmul.f32 %v67, %v72
    %v74 = vadd.f32 %v70, %v73
    %s75 = sld [smem:[#allocation2 + $0xc]]
    %v76 = vstv %s75
    %v77 = vadd.f32 %v74, %v76
    %s78 = sld [smem:[#allocation2 + $0x9]]
    %v79 = vstv %s78
    %v80 = vmul.f32 %v52, %v79
    %s81 = sld [smem:[#allocation2 + $0xb]]
    %v82 = vstv %s81
    %v83 = vmul.f32 %v67, %v82
    %v84 = vadd.f32 %v80, %v83
    %s85 = sld [smem:[#allocation2 + $0xd]]
    %v86 = vstv %s85
    %v87 = vadd.f32 %v84, %v86
    %88 = vst [vmem:[#allocation7] sm:$0x1] %v77
    %89 = vst [vmem:[#allocation7 + $0x1] sm:$0x1] %v87
    // Predicated region
    $region18: #{tpu_custom_call.1} parent=1 // pred_check
      _
    $region19: #{tpu_custom_call.1} parent=1 // pred_check_branch
      %91 = sbr.rel (0) target = $region21
    $region20: #{tpu_custom_call.1} parent=1 // pred_region
      %s93 = ssub.s32 32, 32
      %94 = vsyncadd [#allocation4], %s93
      %s96 = sshll.u32 [#allocation7], 4
      %s97 = int_to_ptr.vmem [resolvable:$true] %s96
      %99 = dma.vmem_to_hbm [thread:$0]  %s97, 32, %s2, [#allocation4]
    $region21: #{tpu_custom_call.1} parent=1 // pred_fallthru
      _
    // Predicated region
    $region22: #{tpu_custom_call.1} parent=1 // pred_check
      _
    $region23: #{tpu_custom_call.1} parent=1 // pred_check_branch
      %101 = sbr.rel (0) target = $region25
    $region24: #{tpu_custom_call.1} parent=1 // pred_region
      %102 = dma.done [#allocation4], 32
    $region25: #{tpu_custom_call.1} parent=1 // pred_fallthru
      _
    %103 = vsyncpa [#allocation3], 1
    %104 = vsyncpa [#allocation4], 1
    %105 = vsyncpa [#allocation5], 1

</llo_original>
